<compile_context>
chip_gen: v7x
topology: tpu7x:2x2x1
jax: 0.10.0
libtpu: 0.0.40
codegen_flags: <defaults>
</compile_context>

<pallas_src>
import jax
import jax.numpy as jnp
from jax import lax
from jax.experimental import pallas as pl
from jax.experimental.pallas import tpu as pltpu


# -----------------------------------------------------------------------------
# Fused kernel: QKV projection + per-head attention + output projection
# -----------------------------------------------------------------------------
def _make_fused_mha_kernel(num_heads, k_dim, v_dim, scale):
    H, Kd, Vd = num_heads, k_dim, v_dim
    k_off = H * Kd
    v_off = 2 * H * Kd

    def kernel(x_ref, wqkv_ref, wo_t_ref, bo_ref, o_ref):
        # x_ref:    (1, S, Din)
        # wqkv_ref: (Din, H*(2*Kd+Vd))   packed [Wq | Wk | Wv]^T
        # wo_t_ref: (H*Vd, Din)
        # bo_ref:   (1, Din)
        # o_ref:    (1, S, Din)
        x = x_ref[0]                                                     # (S, Din)

        # Single lane-dense projection matmul for Q|K|V of every head.
        qkv = jnp.dot(x, wqkv_ref[...], preferred_element_type=jnp.float32)  # (S, 192)

        # TODO(synk): optional `mask` argument of the PyTorch forward is not
        # plumbed through (the default mask=None path is implemented).
        S = x.shape[0]
        Din = wo_t_ref.shape[1]
        out = jnp.zeros((S, Din), dtype=jnp.float32)

        for h in range(H):  # static unrolled loop over heads (all in VMEM/vregs)
            q_h = qkv[:, h * Kd:(h + 1) * Kd]                            # (S, Kd)
            k_h = qkv[:, k_off + h * Kd:k_off + (h + 1) * Kd]            # (S, Kd)
            v_h = qkv[:, v_off + h * Vd:v_off + (h + 1) * Vd]            # (S, Vd)

            # q @ k^T via dot_general (contract on Kd) — no explicit transpose.
            s = lax.dot_general(q_h, k_h, (((1,), (1,)), ((), ())),
                                preferred_element_type=jnp.float32) * scale  # (S, S)
            m = jnp.max(s, axis=-1, keepdims=True)
            p = jnp.exp(s - m)
            p = p * pl.reciprocal(jnp.sum(p, axis=-1, keepdims=True), approx=False)

            ctx_h = jnp.dot(p, v_h, preferred_element_type=jnp.float32)  # (S, Vd)

            # Fused "concat + Wo": concat_h(ctx_h) @ Wo^T == sum_h ctx_h @ Wo^T[hVd:(h+1)Vd]
            out = out + jnp.dot(ctx_h, wo_t_ref[h * Vd:(h + 1) * Vd, :],
                                preferred_element_type=jnp.float32)

        o_ref[0] = out + bo_ref[...]                                     # bias broadcast

    return kernel


# -----------------------------------------------------------------------------
# Wrapper
# -----------------------------------------------------------------------------
def multi_head_attention(x, wq, wk, wv, wo, bo, *, num_heads, k_dim, v_dim):
    """x: (B, S, Din).  Weights follow PyTorch nn.Linear conventions:
       wq/wk: (H*Kd, Din), wv: (H*Vd, Din), wo: (Din, H*Vd), bo: (Din,)."""
    B, S, Din = x.shape
    H, Kd, Vd = num_heads, k_dim, v_dim
    W_tot = H * (2 * Kd + Vd)

    # Pack all projection weights into one (Din, H*(2*Kd+Vd)) slab so the fused
    # kernel does a single lane-dense x @ W matmul per batch element.
    # (For static weights this packing can be precomputed once outside the call.)
    wqkv = jnp.concatenate([wq, wk, wv], axis=0).T       # (Din, W_tot)
    wo_t = wo.T                                          # (H*Vd, Din)
    bo_2d = bo.reshape(1, Din)

    scale = 1.0 / (float(Kd) ** 0.5)
    kernel = _make_fused_mha_kernel(H, Kd, Vd, scale)

    return pl.pallas_call(
        kernel,
        out_shape=jax.ShapeDtypeStruct((B, S, Din), jnp.float32),
        grid=(B,),
        in_specs=[
            pl.BlockSpec((1, S, Din), lambda b: (b, 0, 0)),
            pl.BlockSpec((Din, W_tot), lambda b: (0, 0)),
            pl.BlockSpec((H * Vd, Din), lambda b: (0, 0)),
            pl.BlockSpec((1, Din), lambda b: (0, 0)),
        ],
        out_specs=pl.BlockSpec((1, S, Din), lambda b: (b, 0, 0)),
        compiler_params=pltpu.CompilerParams(
            dimension_semantics=("parallel",)),
    )(x, wqkv, wo_t, bo_2d)


# -----------------------------------------------------------------------------
# Pure-JAX reference (mirrors the PyTorch forward exactly)
# -----------------------------------------------------------------------------
def mha_reference(x, wq, wk, wv, wo, bo, *, num_heads, k_dim, v_dim):
    B, S, Din = x.shape
    H, Kd, Vd = num_heads, k_dim, v_dim
    q = (x @ wq.T).reshape(B, S, H, Kd).transpose(0, 2, 1, 3)          # (B,H,S,Kd)
    k = (x @ wk.T).reshape(B, S, H, Kd).transpose(0, 2, 3, 1)          # (B,H,Kd,S)
    v = (x @ wv.T).reshape(B, S, H, Vd).transpose(0, 2, 1, 3)          # (B,H,S,Vd)
    attn = jnp.matmul(q, k) / (Kd ** 0.5)
    attn = jax.nn.softmax(attn, axis=-1)
    out = jnp.matmul(attn, v).transpose(0, 2, 1, 3).reshape(B, S, H * Vd)
    return out @ wo.T + bo


# -----------------------------------------------------------------------------
# Main
# -----------------------------------------------------------------------------
if __name__ == "__main__":
    # Small shapes consistent with the module's forward.
    B, S = 2, 8
    in_dim, k_dim, v_dim, num_heads = 32, 16, 16, 4

    key = jax.random.PRNGKey(0)
    kx, kq, kk, kv, ko, kb = jax.random.split(key, 6)

    x = jax.random.normal(kx, (B, S, in_dim), dtype=jnp.float32)
    # Deterministic synthetic parameters (PyTorch nn.Linear weight shapes).
    wq = 0.05 * jax.random.normal(kq, (k_dim * num_heads, in_dim), dtype=jnp.float32)
    wk = 0.05 * jax.random.normal(kk, (k_dim * num_heads, in_dim), dtype=jnp.float32)
    wv = 0.05 * jax.random.normal(kv, (v_dim * num_heads, in_dim), dtype=jnp.float32)
    wo = 0.05 * jax.random.normal(ko, (in_dim, v_dim * num_heads), dtype=jnp.float32)
    bo = 0.05 * jax.random.normal(kb, (in_dim,), dtype=jnp.float32)

    out = multi_head_attention(x, wq, wk, wv, wo, bo,
                               num_heads=num_heads, k_dim=k_dim, v_dim=v_dim)
    out = jax.block_until_ready(out)

    ref = mha_reference(x, wq, wk, wv, wo, bo,
                        num_heads=num_heads, k_dim=k_dim, v_dim=v_dim)
    assert out.shape == (B, S, in_dim)
    assert jnp.max(jnp.abs(out - ref)) < 1e-4, "mismatch vs reference"

    print("KERNEL_OK")
</pallas_src>

<mosaic_0001>
module attributes {stable_mosaic.version = 11 : i64} {
  func.func @kernel(%arg0: i32, %arg1: memref<1x8x32xf32, #tpu.memory_space<vmem>>, %arg2: memref<32x192xf32, #tpu.memory_space<vmem>>, %arg3: memref<64x32xf32, #tpu.memory_space<vmem>>, %arg4: memref<1x32xf32, #tpu.memory_space<vmem>>, %arg5: memref<1x8x32xf32, #tpu.memory_space<vmem>>) attributes {dimension_semantics = [#tpu.dimension_semantics<parallel>], iteration_bounds = array<i64: 2>, scalar_prefetch = 0 : i64, scratch_operands = 0 : i64, tpu.core_type = #tpu.core_type<tc>, window_params = [{transform_indices = @transform_0, window_bounds = array<i64: 1, 8, 32>}, {pipeline_mode = #tpu.pipeline_mode<synchronous>, transform_indices = @transform_1, window_bounds = array<i64: 32, 192>}, {pipeline_mode = #tpu.pipeline_mode<synchronous>, transform_indices = @transform_2, window_bounds = array<i64: 64, 32>}, {pipeline_mode = #tpu.pipeline_mode<synchronous>, transform_indices = @transform_3, window_bounds = array<i64: 1, 32>}, {transform_indices = @transform_4, window_bounds = array<i64: 1, 8, 32>}]} {
    %c0 = arith.constant 0 : index
    %c0_0 = arith.constant 0 : index
    %c0_1 = arith.constant 0 : index
    %0 = vector.load %arg1[%c0, %c0_0, %c0_1] : memref<1x8x32xf32, #tpu.memory_space<vmem>>, vector<1x8x32xf32>
    %1 = vector.shape_cast %0 : vector<1x8x32xf32> to vector<8x32xf32>
    %c0_2 = arith.constant 0 : index
    %c0_3 = arith.constant 0 : index
    %2 = vector.load %arg2[%c0_2, %c0_3] : memref<32x192xf32, #tpu.memory_space<vmem>>, vector<32x192xf32>
    %cst = arith.constant dense<0.000000e+00> : vector<8x192xf32>
    %3 = tpu.matmul %1, %2, %cst {dimension_numbers = #tpu.dot_dimension_numbers<[1], [0], [0], [1], [0, 0, 1, 1], [], []>} : vector<8x32xf32>, vector<32x192xf32>, vector<8x192xf32> -> vector<8x192xf32>
    %cst_4 = arith.constant 0.000000e+00 : f32
    %4 = vector.broadcast %cst_4 : f32 to vector<8x32xf32>
    %5 = vector.extract_strided_slice %3 {offsets = [0, 0], sizes = [8, 16], strides = [1, 1]} : vector<8x192xf32> to vector<8x16xf32>
    %6 = vector.extract_strided_slice %3 {offsets = [0, 64], sizes = [8, 16], strides = [1, 1]} : vector<8x192xf32> to vector<8x16xf32>
    %7 = vector.extract_strided_slice %3 {offsets = [0, 128], sizes = [8, 16], strides = [1, 1]} : vector<8x192xf32> to vector<8x16xf32>
    %cst_5 = arith.constant dense<0.000000e+00> : vector<8x8xf32>
    %8 = tpu.matmul %5, %6, %cst_5 {dimension_numbers = #tpu.dot_dimension_numbers<[1], [1], [0], [0], [0, 0, 1, 0], [], []>} : vector<8x16xf32>, vector<8x16xf32>, vector<8x8xf32> -> vector<8x8xf32>
    %cst_6 = arith.constant 2.500000e-01 : f32
    %9 = vector.broadcast %cst_6 : f32 to vector<8x8xf32>
    %10 = arith.mulf %8, %9 : vector<8x8xf32>
    %cst_7 = arith.constant dense<0xFF800000> : vector<8xf32>
    %11 = vector.multi_reduction <maximumf>, %10, %cst_7 [1] : vector<8x8xf32> to vector<8xf32>
    %12 = vector.shape_cast %11 : vector<8xf32> to vector<8x1xf32>
    %13 = vector.broadcast %12 : vector<8x1xf32> to vector<8x8xf32>
    %14 = arith.subf %10, %13 : vector<8x8xf32>
    %15 = math.exp %14 : vector<8x8xf32>
    %cst_8 = arith.constant dense<0.000000e+00> : vector<8xf32>
    %16 = vector.multi_reduction <add>, %15, %cst_8 [1] : vector<8x8xf32> to vector<8xf32>
    %17 = vector.shape_cast %16 : vector<8xf32> to vector<8x1xf32>
    %18 = tpu.reciprocal %17 : vector<8x1xf32> -> vector<8x1xf32>
    %19 = vector.broadcast %18 : vector<8x1xf32> to vector<8x8xf32>
    %20 = arith.mulf %15, %19 : vector<8x8xf32>
    %cst_9 = arith.constant dense<0.000000e+00> : vector<8x16xf32>
    %21 = tpu.matmul %20, %7, %cst_9 {dimension_numbers = #tpu.dot_dimension_numbers<[1], [0], [0], [1], [0, 0, 1, 1], [], []>} : vector<8x8xf32>, vector<8x16xf32>, vector<8x16xf32> -> vector<8x16xf32>
    %c0_10 = arith.constant 0 : index
    %c0_11 = arith.constant 0 : index
    %22 = vector.load %arg3[%c0_10, %c0_11] : memref<64x32xf32, #tpu.memory_space<vmem>>, vector<16x32xf32>
    %cst_12 = arith.constant dense<0.000000e+00> : vector<8x32xf32>
    %23 = tpu.matmul %21, %22, %cst_12 {dimension_numbers = #tpu.dot_dimension_numbers<[1], [0], [0], [1], [0, 0, 1, 1], [], []>} : vector<8x16xf32>, vector<16x32xf32>, vector<8x32xf32> -> vector<8x32xf32>
    %24 = arith.addf %4, %23 : vector<8x32xf32>
    %25 = vector.extract_strided_slice %3 {offsets = [0, 16], sizes = [8, 16], strides = [1, 1]} : vector<8x192xf32> to vector<8x16xf32>
    %26 = vector.extract_strided_slice %3 {offsets = [0, 80], sizes = [8, 16], strides = [1, 1]} : vector<8x192xf32> to vector<8x16xf32>
    %27 = vector.extract_strided_slice %3 {offsets = [0, 144], sizes = [8, 16], strides = [1, 1]} : vector<8x192xf32> to vector<8x16xf32>
    %cst_13 = arith.constant dense<0.000000e+00> : vector<8x8xf32>
    %28 = tpu.matmul %25, %26, %cst_13 {dimension_numbers = #tpu.dot_dimension_numbers<[1], [1], [0], [0], [0, 0, 1, 0], [], []>} : vector<8x16xf32>, vector<8x16xf32>, vector<8x8xf32> -> vector<8x8xf32>
    %cst_14 = arith.constant 2.500000e-01 : f32
    %29 = vector.broadcast %cst_14 : f32 to vector<8x8xf32>
    %30 = arith.mulf %28, %29 : vector<8x8xf32>
    %cst_15 = arith.constant dense<0xFF800000> : vector<8xf32>
    %31 = vector.multi_reduction <maximumf>, %30, %cst_15 [1] : vector<8x8xf32> to vector<8xf32>
    %32 = vector.shape_cast %31 : vector<8xf32> to vector<8x1xf32>
    %33 = vector.broadcast %32 : vector<8x1xf32> to vector<8x8xf32>
    %34 = arith.subf %30, %33 : vector<8x8xf32>
    %35 = math.exp %34 : vector<8x8xf32>
    %cst_16 = arith.constant dense<0.000000e+00> : vector<8xf32>
    %36 = vector.multi_reduction <add>, %35, %cst_16 [1] : vector<8x8xf32> to vector<8xf32>
    %37 = vector.shape_cast %36 : vector<8xf32> to vector<8x1xf32>
    %38 = tpu.reciprocal %37 : vector<8x1xf32> -> vector<8x1xf32>
    %39 = vector.broadcast %38 : vector<8x1xf32> to vector<8x8xf32>
    %40 = arith.mulf %35, %39 : vector<8x8xf32>
    %cst_17 = arith.constant dense<0.000000e+00> : vector<8x16xf32>
    %41 = tpu.matmul %40, %27, %cst_17 {dimension_numbers = #tpu.dot_dimension_numbers<[1], [0], [0], [1], [0, 0, 1, 1], [], []>} : vector<8x8xf32>, vector<8x16xf32>, vector<8x16xf32> -> vector<8x16xf32>
    %c16 = arith.constant 16 : index
    %c0_18 = arith.constant 0 : index
    %42 = vector.load %arg3[%c16, %c0_18] : memref<64x32xf32, #tpu.memory_space<vmem>>, vector<16x32xf32>
    %cst_19 = arith.constant dense<0.000000e+00> : vector<8x32xf32>
    %43 = tpu.matmul %41, %42, %cst_19 {dimension_numbers = #tpu.dot_dimension_numbers<[1], [0], [0], [1], [0, 0, 1, 1], [], []>} : vector<8x16xf32>, vector<16x32xf32>, vector<8x32xf32> -> vector<8x32xf32>
    %44 = arith.addf %24, %43 : vector<8x32xf32>
    %45 = vector.extract_strided_slice %3 {offsets = [0, 32], sizes = [8, 16], strides = [1, 1]} : vector<8x192xf32> to vector<8x16xf32>
    %46 = vector.extract_strided_slice %3 {offsets = [0, 96], sizes = [8, 16], strides = [1, 1]} : vector<8x192xf32> to vector<8x16xf32>
    %47 = vector.extract_strided_slice %3 {offsets = [0, 160], sizes = [8, 16], strides = [1, 1]} : vector<8x192xf32> to vector<8x16xf32>
    %cst_20 = arith.constant dense<0.000000e+00> : vector<8x8xf32>
    %48 = tpu.matmul %45, %46, %cst_20 {dimension_numbers = #tpu.dot_dimension_numbers<[1], [1], [0], [0], [0, 0, 1, 0], [], []>} : vector<8x16xf32>, vector<8x16xf32>, vector<8x8xf32> -> vector<8x8xf32>
    %cst_21 = arith.constant 2.500000e-01 : f32
    %49 = vector.broadcast %cst_21 : f32 to vector<8x8xf32>
    %50 = arith.mulf %48, %49 : vector<8x8xf32>
    %cst_22 = arith.constant dense<0xFF800000> : vector<8xf32>
    %51 = vector.multi_reduction <maximumf>, %50, %cst_22 [1] : vector<8x8xf32> to vector<8xf32>
    %52 = vector.shape_cast %51 : vector<8xf32> to vector<8x1xf32>
    %53 = vector.broadcast %52 : vector<8x1xf32> to vector<8x8xf32>
    %54 = arith.subf %50, %53 : vector<8x8xf32>
    %55 = math.exp %54 : vector<8x8xf32>
    %cst_23 = arith.constant dense<0.000000e+00> : vector<8xf32>
    %56 = vector.multi_reduction <add>, %55, %cst_23 [1] : vector<8x8xf32> to vector<8xf32>
    %57 = vector.shape_cast %56 : vector<8xf32> to vector<8x1xf32>
    %58 = tpu.reciprocal %57 : vector<8x1xf32> -> vector<8x1xf32>
    %59 = vector.broadcast %58 : vector<8x1xf32> to vector<8x8xf32>
    %60 = arith.mulf %55, %59 : vector<8x8xf32>
    %cst_24 = arith.constant dense<0.000000e+00> : vector<8x16xf32>
    %61 = tpu.matmul %60, %47, %cst_24 {dimension_numbers = #tpu.dot_dimension_numbers<[1], [0], [0], [1], [0, 0, 1, 1], [], []>} : vector<8x8xf32>, vector<8x16xf32>, vector<8x16xf32> -> vector<8x16xf32>
    %c32 = arith.constant 32 : index
    %c0_25 = arith.constant 0 : index
    %62 = vector.load %arg3[%c32, %c0_25] : memref<64x32xf32, #tpu.memory_space<vmem>>, vector<16x32xf32>
    %cst_26 = arith.constant dense<0.000000e+00> : vector<8x32xf32>
    %63 = tpu.matmul %61, %62, %cst_26 {dimension_numbers = #tpu.dot_dimension_numbers<[1], [0], [0], [1], [0, 0, 1, 1], [], []>} : vector<8x16xf32>, vector<16x32xf32>, vector<8x32xf32> -> vector<8x32xf32>
    %64 = arith.addf %44, %63 : vector<8x32xf32>
    %65 = vector.extract_strided_slice %3 {offsets = [0, 48], sizes = [8, 16], strides = [1, 1]} : vector<8x192xf32> to vector<8x16xf32>
    %66 = vector.extract_strided_slice %3 {offsets = [0, 112], sizes = [8, 16], strides = [1, 1]} : vector<8x192xf32> to vector<8x16xf32>
    %67 = vector.extract_strided_slice %3 {offsets = [0, 176], sizes = [8, 16], strides = [1, 1]} : vector<8x192xf32> to vector<8x16xf32>
    %cst_27 = arith.constant dense<0.000000e+00> : vector<8x8xf32>
    %68 = tpu.matmul %65, %66, %cst_27 {dimension_numbers = #tpu.dot_dimension_numbers<[1], [1], [0], [0], [0, 0, 1, 0], [], []>} : vector<8x16xf32>, vector<8x16xf32>, vector<8x8xf32> -> vector<8x8xf32>
    %cst_28 = arith.constant 2.500000e-01 : f32
    %69 = vector.broadcast %cst_28 : f32 to vector<8x8xf32>
    %70 = arith.mulf %68, %69 : vector<8x8xf32>
    %cst_29 = arith.constant dense<0xFF800000> : vector<8xf32>
    %71 = vector.multi_reduction <maximumf>, %70, %cst_29 [1] : vector<8x8xf32> to vector<8xf32>
    %72 = vector.shape_cast %71 : vector<8xf32> to vector<8x1xf32>
    %73 = vector.broadcast %72 : vector<8x1xf32> to vector<8x8xf32>
    %74 = arith.subf %70, %73 : vector<8x8xf32>
    %75 = math.exp %74 : vector<8x8xf32>
    %cst_30 = arith.constant dense<0.000000e+00> : vector<8xf32>
    %76 = vector.multi_reduction <add>, %75, %cst_30 [1] : vector<8x8xf32> to vector<8xf32>
    %77 = vector.shape_cast %76 : vector<8xf32> to vector<8x1xf32>
    %78 = tpu.reciprocal %77 : vector<8x1xf32> -> vector<8x1xf32>
    %79 = vector.broadcast %78 : vector<8x1xf32> to vector<8x8xf32>
    %80 = arith.mulf %75, %79 : vector<8x8xf32>
    %cst_31 = arith.constant dense<0.000000e+00> : vector<8x16xf32>
    %81 = tpu.matmul %80, %67, %cst_31 {dimension_numbers = #tpu.dot_dimension_numbers<[1], [0], [0], [1], [0, 0, 1, 1], [], []>} : vector<8x8xf32>, vector<8x16xf32>, vector<8x16xf32> -> vector<8x16xf32>
    %c48 = arith.constant 48 : index
    %c0_32 = arith.constant 0 : index
    %82 = vector.load %arg3[%c48, %c0_32] : memref<64x32xf32, #tpu.memory_space<vmem>>, vector<16x32xf32>
    %cst_33 = arith.constant dense<0.000000e+00> : vector<8x32xf32>
    %83 = tpu.matmul %81, %82, %cst_33 {dimension_numbers = #tpu.dot_dimension_numbers<[1], [0], [0], [1], [0, 0, 1, 1], [], []>} : vector<8x16xf32>, vector<16x32xf32>, vector<8x32xf32> -> vector<8x32xf32>
    %84 = arith.addf %64, %83 : vector<8x32xf32>
    %c0_34 = arith.constant 0 : index
    %c0_35 = arith.constant 0 : index
    %85 = vector.load %arg4[%c0_34, %c0_35] : memref<1x32xf32, #tpu.memory_space<vmem>>, vector<1x32xf32>
    %86 = vector.broadcast %85 : vector<1x32xf32> to vector<8x32xf32>
    %87 = arith.addf %84, %86 : vector<8x32xf32>
    %c0_36 = arith.constant 0 : index
    %c0_37 = arith.constant 0 : index
    %c0_38 = arith.constant 0 : index
    %88 = vector.load %arg5[%c0_36, %c0_37, %c0_38] : memref<1x8x32xf32, #tpu.memory_space<vmem>>, vector<1x8x32xf32>
    %89 = vector.shape_cast %88 : vector<1x8x32xf32> to vector<8x32xf32>
    %90 = vector.shape_cast %87 : vector<8x32xf32> to vector<1x8x32xf32>
    tpu.vector_store %arg5[%c0_36, %c0_37, %c0_38], %90 {strides = array<i32>} : memref<1x8x32xf32, #tpu.memory_space<vmem>>, vector<1x8x32xf32>,
    return
  }
  func.func @transform_0(%arg0: i32) -> (i32, i32, i32) {
    %c0_i32 = arith.constant 0 : i32
    %c0_i32_0 = arith.constant 0 : i32
    %c0_i32_1 = arith.constant 0 : i32
    return %arg0, %c0_i32, %c0_i32_0 : i32, i32, i32
  }
  func.func @transform_1(%arg0: i32) -> (i32, i32) {
    %c0_i32 = arith.constant 0 : i32
    %c0_i32_0 = arith.constant 0 : i32
    %c0_i32_1 = arith.constant 0 : i32
    return %c0_i32, %c0_i32_0 : i32, i32
  }
  func.func @transform_2(%arg0: i32) -> (i32, i32) {
    %c0_i32 = arith.constant 0 : i32
    %c0_i32_0 = arith.constant 0 : i32
    %c0_i32_1 = arith.constant 0 : i32
    return %c0_i32, %c0_i32_0 : i32, i32
  }
  func.func @transform_3(%arg0: i32) -> (i32, i32) {
    %c0_i32 = arith.constant 0 : i32
    %c0_i32_0 = arith.constant 0 : i32
    %c0_i32_1 = arith.constant 0 : i32
    return %c0_i32, %c0_i32_0 : i32, i32
  }
  func.func @transform_4(%arg0: i32) -> (i32, i32, i32) {
    %c0_i32 = arith.constant 0 : i32
    %c0_i32_0 = arith.constant 0 : i32
    %c0_i32_1 = arith.constant 0 : i32
    return %arg0, %c0_i32, %c0_i32_0 : i32, i32, i32
  }
}

</mosaic_0001>

<llo_original>
// kernel: tpu_custom_call.1
$region0: #{tpu_custom_call.1}
  #allocation0 [shape = 'u32[]', space=smem, size = 0x4, offset = 0x4, fixed_abs, tag = 'smem constant byte address 0x4 - core index']
  #allocation1 [shape = 'u32[144,128]{1,0:T(1,128)}', space=vmem, size = 0x12000, scoped, tag = 'internal scratch']
  %s0 = inlined_call_operand.vmem [shape: f32[2,8,32], index: 0, kind: input, shape index: {}]
  %s1 = inlined_call_operand.vmem [shape: f32[32,192], index: 1, kind: input, shape index: {}]
  %s2 = inlined_call_operand.vmem [shape: f32[64,32], index: 2, kind: input, shape index: {}]
  %s3 = inlined_call_operand.vmem [shape: f32[1,32], index: 3, kind: input, shape index: {}]
  %s4 = inlined_call_operand.hbm [shape: f32[2,8,32], index: 4, kind: output, shape index: {}]
  %s5 = sld [smem:[#allocation0]]
  $region49: #{tpu_custom_call.1} parent=0
    _
  %s7 = ssub.s32 1, %s5
  %s8 = scalar_select 0, %s7, %s5
  $region1: #{tpu_custom_call.1} parent=0
    #allocation2 [shape = 'u8[8192]{0}', space=vmem, size = 0x2000, scoped, tag = 'output window, operand 0']
    #allocation3 [shape = 's32[2]{0}', space=sflag, size = 0x8, scoped, tag = 'scoped memory for tpu_custom_call.1']
    %9 = vsyncpa [#allocation3], 0
    %s10 = scalar_lea.sflag [#allocation3], 1
    %11 = vsyncpa %s10, 0
    loop: start=0, step=1, limit=4
    $region2: #{tpu_custom_call.1} parent=1 // loop_pre_header
      _
    $region3: #{tpu_custom_call.1} parent=1 // loop_header
      %s13 = sphi 0, %s17
      %p14 = scmp.ge.s32.totalorder %s13, 4
      %s23 = sphi 0, %s25
      %s26 = sphi 0, %s23
      %s27 = sphi 0, %s26
      %s43 = sphi 0, %s27
      %s47 = sphi 0, %s47
      %s49 = sphi 0, %s47
      %s50 = sphi 0, %s49
      %s64 = sphi 0, %s50
      %s68 = sphi 0, %s68
      %s70 = sphi 0, %s68
      %s71 = sphi 0, %s70
      %s85 = sphi 0, %s71
      %s89 = sphi 0, %s89
      %s91 = sphi 0, %s89
      %s92 = sphi 0, %s91
      %s106 = sphi 0, %s92
      %s112 = sphi 0, %s114
      %s115 = sphi 0, %s112
      %s116 = sphi 0, %s115
      %s132 = sphi 0, %s116
    $region4: #{tpu_custom_call.1} parent=1 // loop_header_branch
      %16 = sbr.rel (%p14) target = $region8
    $region5: #{tpu_custom_call.1} parent=1 // loop_body
      %s18 = ssub.s32 %s13, 1
      %s19 = ssub.s32 %s13, 2
      %s20 = sadd.s32 %s13, 1
      %s21 = ssub.s32 %s13, %s20
      %p22 = scmp.eq.s32.totalorder %s21, 0
      %s24 = sadd.s32 %s23, 1
      %s25 = scalar_select %p22, %s23, %s24
      %p28 = pneg %p22
      %p29 = scmp.eq.s32.totalorder %s13, 1
      %p30 = por %p28, %p29
      %p31 = scmp.ne.s32.totalorder %s23, %s26
      %p32 = scmp.eq.s32.totalorder %s13, 0
      %p33 = por %p31, %p32
      %p34 = scmp.ne.s32.totalorder %s23, %s26
      %p35 = scmp.eq.s32.totalorder %s18, 1
      %p36 = por %p34, %p35
      %p37 = scmp.ne.s32.totalorder %s26, %s27
      %p38 = scmp.eq.s32.totalorder %s18, 0
      %p39 = por %p37, %p38
      %p40 = scmp.ne.s32.totalorder %s26, %s27
      %p41 = scmp.eq.s32.totalorder %s19, 1
      %p42 = por %p40, %p41
      %p44 = scmp.ne.s32.totalorder %s27, %s43
      %p45 = scmp.eq.s32.totalorder %s19, 0
      %p46 = por %p44, %p45
      %s48 = sadd.s32 %s47, 1
      %p51 = scmp.eq.s32.totalorder %s13, 1
      %p52 = scmp.ne.s32.totalorder %s47, %s49
      %p53 = scmp.eq.s32.totalorder %s13, 0
      %p54 = por %p52, %p53
      %p55 = scmp.ne.s32.totalorder %s47, %s49
      %p56 = scmp.eq.s32.totalorder %s18, 1
      %p57 = por %p55, %p56
      %p58 = scmp.ne.s32.totalorder %s49, %s50
      %p59 = scmp.eq.s32.totalorder %s18, 0
      %p60 = por %p58, %p59
      %p61 = scmp.ne.s32.totalorder %s49, %s50
      %p62 = scmp.eq.s32.totalorder %s19, 1
      %p63 = por %p61, %p62
      %p65 = scmp.ne.s32.totalorder %s50, %s64
      %p66 = scmp.eq.s32.totalorder %s19, 0
      %p67 = por %p65, %p66
      %s69 = sadd.s32 %s68, 1
      %p72 = scmp.eq.s32.totalorder %s13, 1
      %p73 = scmp.ne.s32.totalorder %s68, %s70
      %p74 = scmp.eq.s32.totalorder %s13, 0
      %p75 = por %p73, %p74
      %p76 = scmp.ne.s32.totalorder %s68, %s70
      %p77 = scmp.eq.s32.totalorder %s18, 1
      %p78 = por %p76, %p77
      %p79 = scmp.ne.s32.totalorder %s70, %s71
      %p80 = scmp.eq.s32.totalorder %s18, 0
      %p81 = por %p79, %p80
      %p82 = scmp.ne.s32.totalorder %s70, %s71
      %p83 = scmp.eq.s32.totalorder %s19, 1
      %p84 = por %p82, %p83
      %p86 = scmp.ne.s32.totalorder %s71, %s85
      %p87 = scmp.eq.s32.totalorder %s19, 0
      %p88 = por %p86, %p87
      %s90 = sadd.s32 %s89, 1
      %p93 = scmp.eq.s32.totalorder %s13, 1
      %p94 = scmp.ne.s32.totalorder %s89, %s91
      %p95 = scmp.eq.s32.totalorder %s13, 0
      %p96 = por %p94, %p95
      %p97 = scmp.ne.s32.totalorder %s89, %s91
      %p98 = scmp.eq.s32.totalorder %s18, 1
      %p99 = por %p97, %p98
      %p100 = scmp.ne.s32.totalorder %s91, %s92
      %p101 = scmp.eq.s32.totalorder %s18, 0
      %p102 = por %p100, %p101
      %p103 = scmp.ne.s32.totalorder %s91, %s92
      %p104 = scmp.eq.s32.totalorder %s19, 1
      %p105 = por %p103, %p104
      %p107 = scmp.ne.s32.totalorder %s92, %s106
      %p108 = scmp.eq.s32.totalorder %s19, 0
      %p109 = por %p107, %p108
      %s110 = ssub.s32 %s13, %s20
      %p111 = scmp.eq.s32.totalorder %s110, 0
      %s113 = sadd.s32 %s112, 1
      %s114 = scalar_select %p111, %s112, %s113
      %p117 = pneg %p111
      %p118 = scmp.eq.s32.totalorder %s13, 1
      %p119 = por %p117, %p118
      %p120 = scmp.ne.s32.totalorder %s112, %s115
      %p121 = scmp.eq.s32.totalorder %s13, 0
      %p122 = por %p120, %p121
      %p123 = scmp.ne.s32.totalorder %s112, %s115
      %p124 = scmp.eq.s32.totalorder %s18, 1
      %p125 = por %p123, %p124
      %p126 = scmp.ne.s32.totalorder %s115, %s116
      %p127 = scmp.eq.s32.totalorder %s18, 0
      %p128 = por %p126, %p127
      %p129 = scmp.ne.s32.totalorder %s115, %s116
      %p130 = scmp.eq.s32.totalorder %s19, 1
      %p131 = por %p129, %p130
      %p133 = scmp.ne.s32.totalorder %s116, %s132
      %p134 = scmp.eq.s32.totalorder %s19, 0
      %p135 = por %p133, %p134
      %p136 = scmp.le.s32.totalorder 1, %s13
      %p137 = scmp.lt.s32.totalorder %s13, 3
      %p138 = pnand %p136, %p137
      %p139 = pneg %p138
      // Predicated region
      $region9: #{tpu_custom_call.1} parent=5 // pred_check
        _
      $region10: #{tpu_custom_call.1} parent=5 // pred_check_branch
        %141 = sbr.rel (%p138) target = $region12
      $region11: #{tpu_custom_call.1} parent=5 // pred_region
        %s142 = ssub.s32 %s13, 1
        // Predicated region
        $region13: #{tpu_custom_call.1} parent=11 // pred_check
          %p143 = pneg %p60
        $region14: #{tpu_custom_call.1} parent=11 // pred_check_branch
          %145 = sbr.rel (%p143) target = $region16
        $region15: #{tpu_custom_call.1} parent=11 // pred_region
          _
        $region16: #{tpu_custom_call.1} parent=11 // pred_fallthru
          _
        // Predicated region
        $region17: #{tpu_custom_call.1} parent=11 // pred_check
          %p146 = pneg %p81
        $region18: #{tpu_custom_call.1} parent=11 // pred_check_branch
          %148 = sbr.rel (%p146) target = $region20
        $region19: #{tpu_custom_call.1} parent=11 // pred_region
          _
        $region20: #{tpu_custom_call.1} parent=11 // pred_fallthru
          _
        // Predicated region
        $region21: #{tpu_custom_call.1} parent=11 // pred_check
          %p149 = pneg %p102
        $region22: #{tpu_custom_call.1} parent=11 // pred_check_branch
          %151 = sbr.rel (%p149) target = $region24
        $region23: #{tpu_custom_call.1} parent=11 // pred_region
          _
        $region24: #{tpu_custom_call.1} parent=11 // pred_fallthru
          _
      $region12: #{tpu_custom_call.1} parent=5 // pred_fallthru
        _
      %p152 = scmp.lt.s32.totalorder %s13, 2
      // Predicated region
      $region25: #{tpu_custom_call.1} parent=5 // pred_check
        %p153 = pneg %p152
      $region26: #{tpu_custom_call.1} parent=5 // pred_check_branch
        %155 = sbr.rel (%p153) target = $region28
      $region27: #{tpu_custom_call.1} parent=5 // pred_region
        // Predicated region
        $region29: #{tpu_custom_call.1} parent=27 // pred_check
          %p156 = pneg %p33
        $region30: #{tpu_custom_call.1} parent=27 // pred_check_branch
          %158 = sbr.rel (%p156) target = $region32
        $region31: #{tpu_custom_call.1} parent=27 // pred_region
          %p159 = scmp.lt.s32.totalorder %s13, 1
          %s160 = scalar_select %p159, %s13, 1
          %s161 = smul.addr %s160, 8
          %s162 = scalar_lea.vmem %s0, %s161
        $region32: #{tpu_custom_call.1} parent=27 // pred_fallthru
          _
      $region28: #{tpu_custom_call.1} parent=5 // pred_fallthru
        _
      %p163 = scmp.le.s32.totalorder 1, %s13
      %p164 = scmp.lt.s32.totalorder %s13, 3
      %p165 = pnand %p163, %p164
      %p166 = pneg %p165
      // Predicated region
      $region33: #{tpu_custom_call.1} parent=5 // pred_check
        _
      $region34: #{tpu_custom_call.1} parent=5 // pred_check_branch
        %168 = sbr.rel (%p165) target = $region36
      $region35: #{tpu_custom_call.1} parent=5 // pred_region
        %s169 = ssub.s32 %s13, 1
        %p170 = scmp.lt.s32.totalorder %s18, 1
        %s171 = scalar_select %p170, %s18, 1
        %s172 = smul.addr %s171, 8
        %s173 = scalar_lea.vmem %s0, %s172
        %p174 = pneg %p39
        %p175 = pneg %p36
        %p176 = pneg %p60
        %p177 = pneg %p57
        %p178 = pneg %p81
        %p179 = pneg %p78
        %p180 = pneg %p102
        %p181 = pneg %p99
        %p182 = pneg %p128
        %p183 = pneg %p125
        %s184 = sand.u32 %s115, 1
        %s185 = scalar_lea.sflag [#allocation3], %s184
        %s186 = sand.u32 %s115, 1
        %s187 = smul.addr %s186, 8
        %s188 = scalar_lea.vmem [#allocation2], %s187
        %p189 = scmp.lt.s32.totalorder %s18, 1
        %s190 = scalar_select %p189, %s18, 1
        %s191 = smul.addr %s190, 8
        %s192 = scalar_lea.vmem %s0, %s191
        %v193 = vld [vmem:[%s192] sm:$0xff]
        %v194 = vld [vmem:[%s1] sm:$0xff]
        %v195 = vld [vmem:[%s1 + $0x8] sm:$0xff]
        %v196 = vld [vmem:[%s1 + $0x10] sm:$0xff]
        %v197 = vld [vmem:[%s1 + $0x18] sm:$0xff]
        %v198 = vld [vmem:[%s1 + $0x20] sm:$0xff]
        %v199 = vld [vmem:[%s1 + $0x28] sm:$0xff]
        %v200 = vld [vmem:[%s1 + $0x30] sm:$0xff]
        %v201 = vld [vmem:[%s1 + $0x38] sm:$0xff]
        %vm202 = vcmask 261120
        %v204 = vsel %vm202, %v193, 0
        %206 = vmatprep.subr.mxu0 %v195
        %207 = vmatpush1.msra.mxu0 %v194
        %208 = vmatprep.subr.mxu0 %v197
        %209 = vmatpush1.msra.mxu0 %v196
        %210 = vmatprep.subr.mxu0 %v199
        %211 = vmatpush1.msra.mxu0 %v198
        %212 = vmatprep.subr.mxu0 %v201
        %213 = vmatpush1.msra.mxu0 %v200
        %214 = vmatprep.subr.mxu0 0.0
        %215 = vmatpush1.msra.mxu0 0.0
        %216 = vmatprep.subr.mxu0 0.0
        %217 = vmatpush1.msra.mxu0 0.0
        %218 = vmatprep.subr.mxu0 0.0
        %219 = vmatpush1.msra.mxu0 0.0
        %220 = vmatprep.subr.mxu0 0.0
        %221 = vmatpush1.msra.mxu0 0.0
        %222 = vmatprep.subr.mxu0 0.0
        %223 = vmatpush1.msra.mxu0 0.0
        %224 = vmatprep.subr.mxu0 0.0
        %225 = vmatpush1.msra.mxu0 0.0
        %226 = vmatprep.subr.mxu0 0.0
        %227 = vmatpush1.msra.mxu0 0.0
        %228 = vmatprep.subr.mxu0 0.0
        %229 = vmatpush1.msra.mxu0 0.0
        %230 = vmatprep.subr.mxu0 0.0
        %231 = vmatpush1.msra.mxu0 0.0
        %232 = vmatprep.subr.mxu0 0.0
        %233 = vmatpush1.msra.mxu0 0.0
        %234 = vmatprep.subr.mxu0 0.0
        %235 = vmatpush1.msra.mxu0 0.0
        %236 = vmatprep.subr.mxu0 0.0
        %237 = vmatpush1.msra.mxu0 0.0
        %238 = vmatprep.subr.mxu0 0.0
        %239 = vmatpush1.msra.mxu0 0.0
        %240 = vmatprep.subr.mxu0 0.0
        %241 = vmatpush1.msra.mxu0 0.0
        %242 = vmatprep.subr.mxu0 0.0
        %243 = vmatpush1.msra.mxu0 0.0
        %244 = vmatprep.subr.mxu0 0.0
        %245 = vmatpush1.msra.mxu0 0.0
        %246 = vmatprep.subr.mxu0 0.0
        %247 = vmatpush1.msra.mxu0 0.0
        %248 = vmatprep.subr.mxu0 0.0
        %249 = vmatpush1.msra.mxu0 0.0
        %250 = vmatprep.subr.mxu0 0.0
        %251 = vmatpush1.msra.mxu0 0.0
        %252 = vmatprep.subr.mxu0 0.0
        %253 = vmatpush1.msra.mxu0 0.0
        %254 = vmatprep.subr.mxu0 0.0
        %255 = vmatpush1.msra.mxu0 0.0
        %256 = vmatprep.subr.mxu0 0.0
        %257 = vmatpush1.msra.mxu0 0.0
        %258 = vmatprep.subr.mxu0 0.0
        %259 = vmatpush1.msra.mxu0 0.0
        %260 = vmatprep.subr.mxu0 0.0
        %261 = vmatpush1.msra.mxu0 0.0
        %262 = vmatprep.subr.mxu0 0.0
        %263 = vmatpush1.msra.mxu0 0.0
        %264 = vmatprep.subr.mxu0 0.0
        %265 = vmatpush1.msra.mxu0 0.0
        %266 = vmatprep.subr.mxu0 0.0
        %267 = vmatpush1.msra.mxu0 0.0
        %268 = vmatprep.subr.mxu0 0.0
        %269 = vmatpush1.msra.mxu0 0.0
        %270 = vmatprep.mubr.f32.mxu0 0.0
        %271 = vmatmul.mubr.f32.gmra.mrb[0].mxu0 %v204
        %v272 = vpop.f32.mrb[0].mxu0
        %v273 = vadd.f32 0.0, %v272
        %v274 = vpop.f32.mrb[0].mxu0
        %v275 = vadd.f32 0.0, %v274
        %276 = vdwg.mxu0
        %278 = vrot.lane.b32.xlu0 %v273, 64
        %v279 = vpop.permute.xlu0 %278
        %vm280 = vcmask 130048
        %v281 = vsel %vm280, %v273, 0
        %v283 = vsel %vm280, %v279, 0
        %285 = vmatprep.subr.mxu0 0.0
        %286 = vmatpush1.xpose.msra.mxu0 %v283
        %287 = vmatprep.subr.mxu0 0.0
        %288 = vmatpush1.xpose.msra.mxu0 0.0
        %289 = vmatprep.subr.mxu0 0.0
        %290 = vmatpush1.xpose.msra.mxu0 0.0
        %291 = vmatprep.subr.mxu0 0.0
        %292 = vmatpush1.xpose.msra.mxu0 0.0
        %293 = vmatprep.subr.mxu0 0.0
        %294 = vmatpush1.xpose.msra.mxu0 0.0
        %295 = vmatprep.subr.mxu0 0.0
        %296 = vmatpush1.xpose.msra.mxu0 0.0
        %297 = vmatprep.subr.mxu0 0.0
        %298 = vmatpush1.xpose.msra.mxu0 0.0
        %299 = vmatprep.subr.mxu0 0.0
        %300 = vmatpush1.xpose.msra.mxu0 0.0
        %301 = vmatprep.subr.mxu0 0.0
        %302 = vmatpush1.xpose.msra.mxu0 0.0
        %303 = vmatprep.subr.mxu0 0.0
        %304 = vmatpush1.xpose.msra.mxu0 0.0
        %305 = vmatprep.subr.mxu0 0.0
        %306 = vmatpush1.xpose.msra.mxu0 0.0
        %307 = vmatprep.subr.mxu0 0.0
        %308 = vmatpush1.xpose.msra.mxu0 0.0
        %309 = vmatprep.subr.mxu0 0.0
        %310 = vmatpush1.xpose.msra.mxu0 0.0
        %311 = vmatprep.subr.mxu0 0.0
        %312 = vmatpush1.xpose.msra.mxu0 0.0
        %313 = vmatprep.subr.mxu0 0.0
        %314 = vmatpush1.xpose.msra.mxu0 0.0
        %315 = vmatprep.subr.mxu0 0.0
        %316 = vmatpush1.xpose.msra.mxu0 0.0
        %317 = vmatprep.subr.mxu0 0.0
        %318 = vmatpush1.xpose.msra.mxu0 0.0
        %319 = vmatprep.subr.mxu0 0.0
        %320 = vmatpush1.xpose.msra.mxu0 0.0
        %321 = vmatprep.subr.mxu0 0.0
        %322 = vmatpush1.xpose.msra.mxu0 0.0
        %323 = vmatprep.subr.mxu0 0.0
        %324 = vmatpush1.xpose.msra.mxu0 0.0
        %325 = vmatprep.subr.mxu0 0.0
        %326 = vmatpush1.xpose.msra.mxu0 0.0
        %327 = vmatprep.subr.mxu0 0.0
        %328 = vmatpush1.xpose.msra.mxu0 0.0
        %329 = vmatprep.subr.mxu0 0.0
        %330 = vmatpush1.xpose.msra.mxu0 0.0
        %331 = vmatprep.subr.mxu0 0.0
        %332 = vmatpush1.xpose.msra.mxu0 0.0
        %333 = vmatprep.subr.mxu0 0.0
        %334 = vmatpush1.xpose.msra.mxu0 0.0
        %335 = vmatprep.subr.mxu0 0.0
        %336 = vmatpush1.xpose.msra.mxu0 0.0
        %337 = vmatprep.subr.mxu0 0.0
        %338 = vmatpush1.xpose.msra.mxu0 0.0
        %339 = vmatprep.subr.mxu0 0.0
        %340 = vmatpush1.xpose.msra.mxu0 0.0
        %341 = vmatprep.subr.mxu0 0.0
        %342 = vmatpush1.xpose.msra.mxu0 0.0
        %343 = vmatprep.subr.mxu0 0.0
        %344 = vmatpush1.xpose.msra.mxu0 0.0
        %345 = vmatprep.subr.mxu0 0.0
        %346 = vmatpush1.xpose.msra.mxu0 0.0
        %347 = vmatprep.subr.mxu0 0.0
        %348 = vmatpush1.xpose.msra.mxu0 0.0
        %349 = vmatprep.mubr.f32.mxu0 0.0
        %350 = vmatmul.mubr.f32.gmra.mrb[0].mxu0 %v281
        %v351 = vpop.f32.mrb[0].mxu0
        %v352 = vadd.f32 0.0, %v351
        %v353 = vpop.f32.mrb[0].mxu0
        %354 = vdwg.mxu0
        %v355 = vmul.f32 %v352, 0.25
        %vm356 = vcmask 64512
        %v357 = vsel %vm356, %v355, -inf
        %358 = vmax.xlane.f32.xlu0 %v357
        %v359 = vpop.xlane.xlu0 %358
        %v360 = vsub.f32 %v355, %v359
        %v361 = vmul.f32 %v360, 1.442695
        %v362 = vpow.pop %v361
        %v363 = vsel %vm356, %v362, 0.0
        %364 = vadd.xlane.f32.xlu0 %v363
        %v365 = vpop.xlane.xlu0 %364
        %v366 = vrcp.pop %v365
        %v367 = vmul.f32 %v362, %v366
        %v369 = vsel %vm356, %v367, 0
        %371 = vmatprep.subr.mxu0 0.0
        %372 = vmatpush1.msra.mxu0 %v275
        %373 = vmatprep.subr.mxu0 0.0
        %374 = vmatpush1.msra.mxu0 0.0
        %375 = vmatprep.subr.mxu0 0.0
        %376 = vmatpush1.msra.mxu0 0.0
        %377 = vmatprep.subr.mxu0 0.0
        %378 = vmatpush1.msra.mxu0 0.0
        %379 = vmatprep.subr.mxu0 0.0
        %380 = vmatpush1.msra.mxu0 0.0
        %381 = vmatprep.subr.mxu0 0.0
        %382 = vmatpush1.msra.mxu0 0.0
        %383 = vmatprep.subr.mxu0 0.0
        %384 = vmatpush1.msra.mxu0 0.0
        %385 = vmatprep.subr.mxu0 0.0
        %386 = vmatpush1.msra.mxu0 0.0
        %387 = vmatprep.subr.mxu0 0.0
        %388 = vmatpush1.msra.mxu0 0.0
        %389 = vmatprep.subr.mxu0 0.0
        %390 = vmatpush1.msra.mxu0 0.0
        %391 = vmatprep.subr.mxu0 0.0
        %392 = vmatpush1.msra.mxu0 0.0
        %393 = vmatprep.subr.mxu0 0.0
        %394 = vmatpush1.msra.mxu0 0.0
        %395 = vmatprep.subr.mxu0 0.0
        %396 = vmatpush1.msra.mxu0 0.0
        %397 = vmatprep.subr.mxu0 0.0
        %398 = vmatpush1.msra.mxu0 0.0
        %399 = vmatprep.subr.mxu0 0.0
        %400 = vmatpush1.msra.mxu0 0.0
        %401 = vmatprep.subr.mxu0 0.0
        %402 = vmatpush1.msra.mxu0 0.0
        %403 = vmatprep.subr.mxu0 0.0
        %404 = vmatpush1.msra.mxu0 0.0
        %405 = vmatprep.subr.mxu0 0.0
        %406 = vmatpush1.msra.mxu0 0.0
        %407 = vmatprep.subr.mxu0 0.0
        %408 = vmatpush1.msra.mxu0 0.0
        %409 = vmatprep.subr.mxu0 0.0
        %410 = vmatpush1.msra.mxu0 0.0
        %411 = vmatprep.subr.mxu0 0.0
        %412 = vmatpush1.msra.mxu0 0.0
        %413 = vmatprep.subr.mxu0 0.0
        %414 = vmatpush1.msra.mxu0 0.0
        %415 = vmatprep.subr.mxu0 0.0
        %416 = vmatpush1.msra.mxu0 0.0
        %417 = vmatprep.subr.mxu0 0.0
        %418 = vmatpush1.msra.mxu0 0.0
        %419 = vmatprep.subr.mxu0 0.0
        %420 = vmatpush1.msra.mxu0 0.0
        %421 = vmatprep.subr.mxu0 0.0
        %422 = vmatpush1.msra.mxu0 0.0
        %423 = vmatprep.subr.mxu0 0.0
        %424 = vmatpush1.msra.mxu0 0.0
        %425 = vmatprep.subr.mxu0 0.0
        %426 = vmatpush1.msra.mxu0 0.0
        %427 = vmatprep.subr.mxu0 0.0
        %428 = vmatpush1.msra.mxu0 0.0
        %429 = vmatprep.subr.mxu0 0.0
        %430 = vmatpush1.msra.mxu0 0.0
        %431 = vmatprep.subr.mxu0 0.0
        %432 = vmatpush1.msra.mxu0 0.0
        %433 = vmatprep.subr.mxu0 0.0
        %434 = vmatpush1.msra.mxu0 0.0
        %435 = vmatprep.mubr.f32.mxu0 0.0
        %436 = vmatmul.mubr.f32.gmra.mrb[0].mxu0 %v369
        %v437 = vpop.f32.mrb[0].mxu0
        %v438 = vadd.f32 0.0, %v437
        %v439 = vpop.f32.mrb[0].mxu0
        %440 = vdwg.mxu0
        %v441 = vld [vmem:[%s2] sm:$0xff]
        %v442 = vld [vmem:[%s2 + $0x8] sm:$0xff]
        %443 = vrot.lane.b32.xlu0 %v273, 112
        %v444 = vpop.permute.xlu0 %443
        %445 = vrot.lane.b32.xlu0 %v273, 48
        %v446 = vpop.permute.xlu0 %445
        %v447 = vsel %vm280, %v444, 0
        %v449 = vsel %vm280, %v446, 0
        %451 = vmatprep.subr.mxu0 0.0
        %452 = vmatpush1.xpose.msra.mxu0 %v449
        %453 = vmatprep.subr.mxu0 0.0
        %454 = vmatpush1.xpose.msra.mxu0 0.0
        %455 = vmatprep.subr.mxu0 0.0
        %456 = vmatpush1.xpose.msra.mxu0 0.0
        %457 = vmatprep.subr.mxu0 0.0
        %458 = vmatpush1.xpose.msra.mxu0 0.0
        %459 = vmatprep.subr.mxu0 0.0
        %460 = vmatpush1.xpose.msra.mxu0 0.0
        %461 = vmatprep.subr.mxu0 0.0
        %462 = vmatpush1.xpose.msra.mxu0 0.0
        %463 = vmatprep.subr.mxu0 0.0
        %464 = vmatpush1.xpose.msra.mxu0 0.0
        %465 = vmatprep.subr.mxu0 0.0
        %466 = vmatpush1.xpose.msra.mxu0 0.0
        %467 = vmatprep.subr.mxu0 0.0
        %468 = vmatpush1.xpose.msra.mxu0 0.0
        %469 = vmatprep.subr.mxu0 0.0
        %470 = vmatpush1.xpose.msra.mxu0 0.0
        %471 = vmatprep.subr.mxu0 0.0
        %472 = vmatpush1.xpose.msra.mxu0 0.0
        %473 = vmatprep.subr.mxu0 0.0
        %474 = vmatpush1.xpose.msra.mxu0 0.0
        %475 = vmatprep.subr.mxu0 0.0
        %476 = vmatpush1.xpose.msra.mxu0 0.0
        %477 = vmatprep.subr.mxu0 0.0
        %478 = vmatpush1.xpose.msra.mxu0 0.0
        %479 = vmatprep.subr.mxu0 0.0
        %480 = vmatpush1.xpose.msra.mxu0 0.0
        %481 = vmatprep.subr.mxu0 0.0
        %482 = vmatpush1.xpose.msra.mxu0 0.0
        %483 = vmatprep.subr.mxu0 0.0
        %484 = vmatpush1.xpose.msra.mxu0 0.0
        %485 = vmatprep.subr.mxu0 0.0
        %486 = vmatpush1.xpose.msra.mxu0 0.0
        %487 = vmatprep.subr.mxu0 0.0
        %488 = vmatpush1.xpose.msra.mxu0 0.0
        %489 = vmatprep.subr.mxu0 0.0
        %490 = vmatpush1.xpose.msra.mxu0 0.0
        %491 = vmatprep.subr.mxu0 0.0
        %492 = vmatpush1.xpose.msra.mxu0 0.0
        %493 = vmatprep.subr.mxu0 0.0
        %494 = vmatpush1.xpose.msra.mxu0 0.0
        %495 = vmatprep.subr.mxu0 0.0
        %496 = vmatpush1.xpose.msra.mxu0 0.0
        %497 = vmatprep.subr.mxu0 0.0
        %498 = vmatpush1.xpose.msra.mxu0 0.0
        %499 = vmatprep.subr.mxu0 0.0
        %500 = vmatpush1.xpose.msra.mxu0 0.0
        %501 = vmatprep.subr.mxu0 0.0
        %502 = vmatpush1.xpose.msra.mxu0 0.0
        %503 = vmatprep.subr.mxu0 0.0
        %504 = vmatpush1.xpose.msra.mxu0 0.0
        %505 = vmatprep.subr.mxu0 0.0
        %506 = vmatpush1.xpose.msra.mxu0 0.0
        %507 = vmatprep.subr.mxu0 0.0
        %508 = vmatpush1.xpose.msra.mxu0 0.0
        %509 = vmatprep.subr.mxu0 0.0
        %510 = vmatpush1.xpose.msra.mxu0 0.0
        %511 = vmatprep.subr.mxu0 0.0
        %512 = vmatpush1.xpose.msra.mxu0 0.0
        %513 = vmatprep.subr.mxu0 0.0
        %514 = vmatpush1.xpose.msra.mxu0 0.0
        %515 = vmatprep.mubr.f32.mxu0 0.0
        %516 = vmatmul.mubr.f32.gmra.mrb[0].mxu0 %v447
        %v517 = vpop.f32.mrb[0].mxu0
        %v518 = vadd.f32 0.0, %v517
        %v519 = vpop.f32.mrb[0].mxu0
        %520 = vdwg.mxu0
        %v521 = vmul.f32 %v518, 0.25
        %v522 = vsel %vm356, %v521, -inf
        %523 = vmax.xlane.f32.xlu0 %v522
        %v524 = vpop.xlane.xlu0 %523
        %v525 = vsub.f32 %v521, %v524
        %v526 = vmul.f32 %v525, 1.442695
        %v527 = vpow.pop %v526
        %v528 = vsel %vm356, %v527, 0.0
        %529 = vadd.xlane.f32.xlu0 %v528
        %v530 = vpop.xlane.xlu0 %529
        %v531 = vrcp.pop %v530
        %v532 = vmul.f32 %v527, %v531
        %534 = vrot.lane.b32.xlu0 %v275, 112
        %v535 = vpop.permute.xlu0 %534
        %v538 = vsel %vm356, %v532, 0
        %540 = vmatprep.subr.mxu0 0.0
        %541 = vmatpush1.msra.mxu0 %v535
        %542 = vmatprep.subr.mxu0 0.0
        %543 = vmatpush1.msra.mxu0 0.0
        %544 = vmatprep.subr.mxu0 0.0
        %545 = vmatpush1.msra.mxu0 0.0
        %546 = vmatprep.subr.mxu0 0.0
        %547 = vmatpush1.msra.mxu0 0.0
        %548 = vmatprep.subr.mxu0 0.0
        %549 = vmatpush1.msra.mxu0 0.0
        %550 = vmatprep.subr.mxu0 0.0
        %551 = vmatpush1.msra.mxu0 0.0
        %552 = vmatprep.subr.mxu0 0.0
        %553 = vmatpush1.msra.mxu0 0.0
        %554 = vmatprep.subr.mxu0 0.0
        %555 = vmatpush1.msra.mxu0 0.0
        %556 = vmatprep.subr.mxu0 0.0
        %557 = vmatpush1.msra.mxu0 0.0
        %558 = vmatprep.subr.mxu0 0.0
        %559 = vmatpush1.msra.mxu0 0.0
        %560 = vmatprep.subr.mxu0 0.0
        %561 = vmatpush1.msra.mxu0 0.0
        %562 = vmatprep.subr.mxu0 0.0
        %563 = vmatpush1.msra.mxu0 0.0
        %564 = vmatprep.subr.mxu0 0.0
        %565 = vmatpush1.msra.mxu0 0.0
        %566 = vmatprep.subr.mxu0 0.0
        %567 = vmatpush1.msra.mxu0 0.0
        %568 = vmatprep.subr.mxu0 0.0
        %569 = vmatpush1.msra.mxu0 0.0
        %570 = vmatprep.subr.mxu0 0.0
        %571 = vmatpush1.msra.mxu0 0.0
        %572 = vmatprep.subr.mxu0 0.0
        %573 = vmatpush1.msra.mxu0 0.0
        %574 = vmatprep.subr.mxu0 0.0
        %575 = vmatpush1.msra.mxu0 0.0
        %576 = vmatprep.subr.mxu0 0.0
        %577 = vmatpush1.msra.mxu0 0.0
        %578 = vmatprep.subr.mxu0 0.0
        %579 = vmatpush1.msra.mxu0 0.0
        %580 = vmatprep.subr.mxu0 0.0
        %581 = vmatpush1.msra.mxu0 0.0
        %582 = vmatprep.subr.mxu0 0.0
        %583 = vmatpush1.msra.mxu0 0.0
        %584 = vmatprep.subr.mxu0 0.0
        %585 = vmatpush1.msra.mxu0 0.0
        %586 = vmatprep.subr.mxu0 0.0
        %587 = vmatpush1.msra.mxu0 0.0
        %588 = vmatprep.subr.mxu0 0.0
        %589 = vmatpush1.msra.mxu0 0.0
        %590 = vmatprep.subr.mxu0 0.0
        %591 = vmatpush1.msra.mxu0 0.0
        %592 = vmatprep.subr.mxu0 0.0
        %593 = vmatpush1.msra.mxu0 0.0
        %594 = vmatprep.subr.mxu0 0.0
        %595 = vmatpush1.msra.mxu0 0.0
        %596 = vmatprep.subr.mxu0 0.0
        %597 = vmatpush1.msra.mxu0 0.0
        %598 = vmatprep.subr.mxu0 0.0
        %599 = vmatpush1.msra.mxu0 0.0
        %600 = vmatprep.subr.mxu0 0.0
        %601 = vmatpush1.msra.mxu0 0.0
        %602 = vmatprep.subr.mxu0 0.0
        %603 = vmatpush1.msra.mxu0 0.0
        %604 = vmatprep.mubr.f32.mxu0 0.0
        %605 = vmatmul.mubr.f32.gmra.mrb[0].mxu0 %v538
        %v606 = vpop.f32.mrb[0].mxu0
        %v607 = vadd.f32 0.0, %v606
        %v608 = vpop.f32.mrb[0].mxu0
        %609 = vdwg.mxu0
        %v610 = vld [vmem:[%s2 + $0x10] sm:$0xff]
        %v611 = vld [vmem:[%s2 + $0x18] sm:$0xff]
        %v613 = vsel %vm280, %v607, 0
        %615 = vmatprep.subr.mxu0 0.0
        %616 = vmatpush1.msra.mxu0 %v610
        %617 = vmatprep.subr.mxu0 0.0
        %618 = vmatpush1.msra.mxu0 %v611
        %619 = vmatprep.subr.mxu0 0.0
        %620 = vmatpush1.msra.mxu0 0.0
        %621 = vmatprep.subr.mxu0 0.0
        %622 = vmatpush1.msra.mxu0 0.0
        %623 = vmatprep.subr.mxu0 0.0
        %624 = vmatpush1.msra.mxu0 0.0
        %625 = vmatprep.subr.mxu0 0.0
        %626 = vmatpush1.msra.mxu0 0.0
        %627 = vmatprep.subr.mxu0 0.0
        %628 = vmatpush1.msra.mxu0 0.0
        %629 = vmatprep.subr.mxu0 0.0
        %630 = vmatpush1.msra.mxu0 0.0
        %631 = vmatprep.subr.mxu0 0.0
        %632 = vmatpush1.msra.mxu0 0.0
        %633 = vmatprep.subr.mxu0 0.0
        %634 = vmatpush1.msra.mxu0 0.0
        %635 = vmatprep.subr.mxu0 0.0
        %636 = vmatpush1.msra.mxu0 0.0
        %637 = vmatprep.subr.mxu0 0.0
        %638 = vmatpush1.msra.mxu0 0.0
        %639 = vmatprep.subr.mxu0 0.0
        %640 = vmatpush1.msra.mxu0 0.0
        %641 = vmatprep.subr.mxu0 0.0
        %642 = vmatpush1.msra.mxu0 0.0
        %643 = vmatprep.subr.mxu0 0.0
        %644 = vmatpush1.msra.mxu0 0.0
        %645 = vmatprep.subr.mxu0 0.0
        %646 = vmatpush1.msra.mxu0 0.0
        %647 = vmatprep.subr.mxu0 0.0
        %648 = vmatpush1.msra.mxu0 0.0
        %649 = vmatprep.subr.mxu0 0.0
        %650 = vmatpush1.msra.mxu0 0.0
        %651 = vmatprep.subr.mxu0 0.0
        %652 = vmatpush1.msra.mxu0 0.0
        %653 = vmatprep.subr.mxu0 0.0
        %654 = vmatpush1.msra.mxu0 0.0
        %655 = vmatprep.subr.mxu0 0.0
        %656 = vmatpush1.msra.mxu0 0.0
        %657 = vmatprep.subr.mxu0 0.0
        %658 = vmatpush1.msra.mxu0 0.0
        %659 = vmatprep.subr.mxu0 0.0
        %660 = vmatpush1.msra.mxu0 0.0
        %661 = vmatprep.subr.mxu0 0.0
        %662 = vmatpush1.msra.mxu0 0.0
        %663 = vmatprep.subr.mxu0 0.0
        %664 = vmatpush1.msra.mxu0 0.0
        %665 = vmatprep.subr.mxu0 0.0
        %666 = vmatpush1.msra.mxu0 0.0
        %667 = vmatprep.subr.mxu0 0.0
        %668 = vmatpush1.msra.mxu0 0.0
        %669 = vmatprep.subr.mxu0 0.0
        %670 = vmatpush1.msra.mxu0 0.0
        %671 = vmatprep.subr.mxu0 0.0
        %672 = vmatpush1.msra.mxu0 0.0
        %673 = vmatprep.subr.mxu0 0.0
        %674 = vmatpush1.msra.mxu0 0.0
        %675 = vmatprep.subr.mxu0 0.0
        %676 = vmatpush1.msra.mxu0 0.0
        %677 = vmatprep.subr.mxu0 0.0
        %678 = vmatpush1.msra.mxu0 0.0
        %679 = vmatprep.mubr.f32.mxu0 0.0
        %680 = vmatmul.mubr.f32.gmra.mrb[0].mxu0 %v613
        %v681 = vpop.f32.mrb[0].mxu0
        %v682 = vadd.f32 0.0, %v681
        %v683 = vpop.f32.mrb[0].mxu0
        %684 = vdwg.mxu0
        %v686 = vsel %vm280, %v438, 0
        %688 = vmatprep.subr.mxu0 0.0
        %689 = vmatpush1.msra.mxu0 %v441
        %690 = vmatprep.subr.mxu0 0.0
        %691 = vmatpush1.msra.mxu0 %v442
        %692 = vmatprep.subr.mxu0 0.0
        %693 = vmatpush1.msra.mxu0 0.0
        %694 = vmatprep.subr.mxu0 0.0
        %695 = vmatpush1.msra.mxu0 0.0
        %696 = vmatprep.subr.mxu0 0.0
        %697 = vmatpush1.msra.mxu0 0.0
        %698 = vmatprep.subr.mxu0 0.0
        %699 = vmatpush1.msra.mxu0 0.0
        %700 = vmatprep.subr.mxu0 0.0
        %701 = vmatpush1.msra.mxu0 0.0
        %702 = vmatprep.subr.mxu0 0.0
        %703 = vmatpush1.msra.mxu0 0.0
        %704 = vmatprep.subr.mxu0 0.0
        %705 = vmatpush1.msra.mxu0 0.0
        %706 = vmatprep.subr.mxu0 0.0
        %707 = vmatpush1.msra.mxu0 0.0
        %708 = vmatprep.subr.mxu0 0.0
        %709 = vmatpush1.msra.mxu0 0.0
        %710 = vmatprep.subr.mxu0 0.0
        %711 = vmatpush1.msra.mxu0 0.0
        %712 = vmatprep.subr.mxu0 0.0
        %713 = vmatpush1.msra.mxu0 0.0
        %714 = vmatprep.subr.mxu0 0.0
        %715 = vmatpush1.msra.mxu0 0.0
        %716 = vmatprep.subr.mxu0 0.0
        %717 = vmatpush1.msra.mxu0 0.0
        %718 = vmatprep.subr.mxu0 0.0
        %719 = vmatpush1.msra.mxu0 0.0
        %720 = vmatprep.subr.mxu0 0.0
        %721 = vmatpush1.msra.mxu0 0.0
        %722 = vmatprep.subr.mxu0 0.0
        %723 = vmatpush1.msra.mxu0 0.0
        %724 = vmatprep.subr.mxu0 0.0
        %725 = vmatpush1.msra.mxu0 0.0
        %726 = vmatprep.subr.mxu0 0.0
        %727 = vmatpush1.msra.mxu0 0.0
        %728 = vmatprep.subr.mxu0 0.0
        %729 = vmatpush1.msra.mxu0 0.0
        %730 = vmatprep.subr.mxu0 0.0
        %731 = vmatpush1.msra.mxu0 0.0
        %732 = vmatprep.subr.mxu0 0.0
        %733 = vmatpush1.msra.mxu0 0.0
        %734 = vmatprep.subr.mxu0 0.0
        %735 = vmatpush1.msra.mxu0 0.0
        %736 = vmatprep.subr.mxu0 0.0
        %737 = vmatpush1.msra.mxu0 0.0
        %738 = vmatprep.subr.mxu0 0.0
        %739 = vmatpush1.msra.mxu0 0.0
        %740 = vmatprep.subr.mxu0 0.0
        %741 = vmatpush1.msra.mxu0 0.0
        %742 = vmatprep.subr.mxu0 0.0
        %743 = vmatpush1.msra.mxu0 0.0
        %744 = vmatprep.subr.mxu0 0.0
        %745 = vmatpush1.msra.mxu0 0.0
        %746 = vmatprep.subr.mxu0 0.0
        %747 = vmatpush1.msra.mxu0 0.0
        %748 = vmatprep.subr.mxu0 0.0
        %749 = vmatpush1.msra.mxu0 0.0
        %750 = vmatprep.subr.mxu0 0.0
        %751 = vmatpush1.msra.mxu0 0.0
        %752 = vmatprep.mubr.f32.mxu0 0.0
        %753 = vmatmul.mubr.f32.gmra.mrb[0].mxu0 %v686
        %v754 = vpop.f32.mrb[0].mxu0
        %v755 = vadd.f32 %v682, %v754
        %v756 = vpop.f32.mrb[0].mxu0
        %757 = vdwg.mxu0
        %758 = vrot.lane.b32.xlu0 %v273, 96
        %v759 = vpop.permute.xlu0 %758
        %760 = vrot.lane.b32.xlu0 %v273, 32
        %v761 = vpop.permute.xlu0 %760
        %v762 = vsel %vm280, %v759, 0
        %v764 = vsel %vm280, %v761, 0
        %766 = vmatprep.subr.mxu0 0.0
        %767 = vmatpush1.xpose.msra.mxu0 %v764
        %768 = vmatprep.subr.mxu0 0.0
        %769 = vmatpush1.xpose.msra.mxu0 0.0
        %770 = vmatprep.subr.mxu0 0.0
        %771 = vmatpush1.xpose.msra.mxu0 0.0
        %772 = vmatprep.subr.mxu0 0.0
        %773 = vmatpush1.xpose.msra.mxu0 0.0
        %774 = vmatprep.subr.mxu0 0.0
        %775 = vmatpush1.xpose.msra.mxu0 0.0
        %776 = vmatprep.subr.mxu0 0.0
        %777 = vmatpush1.xpose.msra.mxu0 0.0
        %778 = vmatprep.subr.mxu0 0.0
        %779 = vmatpush1.xpose.msra.mxu0 0.0
        %780 = vmatprep.subr.mxu0 0.0
        %781 = vmatpush1.xpose.msra.mxu0 0.0
        %782 = vmatprep.subr.mxu0 0.0
        %783 = vmatpush1.xpose.msra.mxu0 0.0
        %784 = vmatprep.subr.mxu0 0.0
        %785 = vmatpush1.xpose.msra.mxu0 0.0
        %786 = vmatprep.subr.mxu0 0.0
        %787 = vmatpush1.xpose.msra.mxu0 0.0
        %788 = vmatprep.subr.mxu0 0.0
        %789 = vmatpush1.xpose.msra.mxu0 0.0
        %790 = vmatprep.subr.mxu0 0.0
        %791 = vmatpush1.xpose.msra.mxu0 0.0
        %792 = vmatprep.subr.mxu0 0.0
        %793 = vmatpush1.xpose.msra.mxu0 0.0
        %794 = vmatprep.subr.mxu0 0.0
        %795 = vmatpush1.xpose.msra.mxu0 0.0
        %796 = vmatprep.subr.mxu0 0.0
        %797 = vmatpush1.xpose.msra.mxu0 0.0
        %798 = vmatprep.subr.mxu0 0.0
        %799 = vmatpush1.xpose.msra.mxu0 0.0
        %800 = vmatprep.subr.mxu0 0.0
        %801 = vmatpush1.xpose.msra.mxu0 0.0
        %802 = vmatprep.subr.mxu0 0.0
        %803 = vmatpush1.xpose.msra.mxu0 0.0
        %804 = vmatprep.subr.mxu0 0.0
        %805 = vmatpush1.xpose.msra.mxu0 0.0
        %806 = vmatprep.subr.mxu0 0.0
        %807 = vmatpush1.xpose.msra.mxu0 0.0
        %808 = vmatprep.subr.mxu0 0.0
        %809 = vmatpush1.xpose.msra.mxu0 0.0
        %810 = vmatprep.subr.mxu0 0.0
        %811 = vmatpush1.xpose.msra.mxu0 0.0
        %812 = vmatprep.subr.mxu0 0.0
        %813 = vmatpush1.xpose.msra.mxu0 0.0
        %814 = vmatprep.subr.mxu0 0.0
        %815 = vmatpush1.xpose.msra.mxu0 0.0
        %816 = vmatprep.subr.mxu0 0.0
        %817 = vmatpush1.xpose.msra.mxu0 0.0
        %818 = vmatprep.subr.mxu0 0.0
        %819 = vmatpush1.xpose.msra.mxu0 0.0
        %820 = vmatprep.subr.mxu0 0.0
        %821 = vmatpush1.xpose.msra.mxu0 0.0
        %822 = vmatprep.subr.mxu0 0.0
        %823 = vmatpush1.xpose.msra.mxu0 0.0
        %824 = vmatprep.subr.mxu0 0.0
        %825 = vmatpush1.xpose.msra.mxu0 0.0
        %826 = vmatprep.subr.mxu0 0.0
        %827 = vmatpush1.xpose.msra.mxu0 0.0
        %828 = vmatprep.subr.mxu0 0.0
        %829 = vmatpush1.xpose.msra.mxu0 0.0
        %830 = vmatprep.mubr.f32.mxu0 0.0
        %831 = vmatmul.mubr.f32.gmra.mrb[0].mxu0 %v762
        %v832 = vpop.f32.mrb[0].mxu0
        %v833 = vadd.f32 0.0, %v832
        %v834 = vpop.f32.mrb[0].mxu0
        %835 = vdwg.mxu0
        %v836 = vmul.f32 %v833, 0.25
        %v837 = vsel %vm356, %v836, -inf
        %838 = vmax.xlane.f32.xlu0 %v837
        %v839 = vpop.xlane.xlu0 %838
        %v840 = vsub.f32 %v836, %v839
        %v841 = vmul.f32 %v840, 1.442695
        %v842 = vpow.pop %v841
        %v843 = vsel %vm356, %v842, 0.0
        %844 = vadd.xlane.f32.xlu0 %v843
        %v845 = vpop.xlane.xlu0 %844
        %v846 = vrcp.pop %v845
        %v847 = vmul.f32 %v842, %v846
        %848 = vrot.lane.b32.xlu0 %v275, 96
        %v849 = vpop.permute.xlu0 %848
        %v852 = vsel %vm356, %v847, 0
        %854 = vmatprep.subr.mxu0 0.0
        %855 = vmatpush1.msra.mxu0 %v849
        %856 = vmatprep.subr.mxu0 0.0
        %857 = vmatpush1.msra.mxu0 0.0
        %858 = vmatprep.subr.mxu0 0.0
        %859 = vmatpush1.msra.mxu0 0.0
        %860 = vmatprep.subr.mxu0 0.0
        %861 = vmatpush1.msra.mxu0 0.0
        %862 = vmatprep.subr.mxu0 0.0
        %863 = vmatpush1.msra.mxu0 0.0
        %864 = vmatprep.subr.mxu0 0.0
        %865 = vmatpush1.msra.mxu0 0.0
        %866 = vmatprep.subr.mxu0 0.0
        %867 = vmatpush1.msra.mxu0 0.0
        %868 = vmatprep.subr.mxu0 0.0
        %869 = vmatpush1.msra.mxu0 0.0
        %870 = vmatprep.subr.mxu0 0.0
        %871 = vmatpush1.msra.mxu0 0.0
        %872 = vmatprep.subr.mxu0 0.0
        %873 = vmatpush1.msra.mxu0 0.0
        %874 = vmatprep.subr.mxu0 0.0
        %875 = vmatpush1.msra.mxu0 0.0
        %876 = vmatprep.subr.mxu0 0.0
        %877 = vmatpush1.msra.mxu0 0.0
        %878 = vmatprep.subr.mxu0 0.0
        %879 = vmatpush1.msra.mxu0 0.0
        %880 = vmatprep.subr.mxu0 0.0
        %881 = vmatpush1.msra.mxu0 0.0
        %882 = vmatprep.subr.mxu0 0.0
        %883 = vmatpush1.msra.mxu0 0.0
        %884 = vmatprep.subr.mxu0 0.0
        %885 = vmatpush1.msra.mxu0 0.0
        %886 = vmatprep.subr.mxu0 0.0
        %887 = vmatpush1.msra.mxu0 0.0
        %888 = vmatprep.subr.mxu0 0.0
        %889 = vmatpush1.msra.mxu0 0.0
        %890 = vmatprep.subr.mxu0 0.0
        %891 = vmatpush1.msra.mxu0 0.0
        %892 = vmatprep.subr.mxu0 0.0
        %893 = vmatpush1.msra.mxu0 0.0
        %894 = vmatprep.subr.mxu0 0.0
        %895 = vmatpush1.msra.mxu0 0.0
        %896 = vmatprep.subr.mxu0 0.0
        %897 = vmatpush1.msra.mxu0 0.0
        %898 = vmatprep.subr.mxu0 0.0
        %899 = vmatpush1.msra.mxu0 0.0
        %900 = vmatprep.subr.mxu0 0.0
        %901 = vmatpush1.msra.mxu0 0.0
        %902 = vmatprep.subr.mxu0 0.0
        %903 = vmatpush1.msra.mxu0 0.0
        %904 = vmatprep.subr.mxu0 0.0
        %905 = vmatpush1.msra.mxu0 0.0
        %906 = vmatprep.subr.mxu0 0.0
        %907 = vmatpush1.msra.mxu0 0.0
        %908 = vmatprep.subr.mxu0 0.0
        %909 = vmatpush1.msra.mxu0 0.0
        %910 = vmatprep.subr.mxu0 0.0
        %911 = vmatpush1.msra.mxu0 0.0
        %912 = vmatprep.subr.mxu0 0.0
        %913 = vmatpush1.msra.mxu0 0.0
        %914 = vmatprep.subr.mxu0 0.0
        %915 = vmatpush1.msra.mxu0 0.0
        %916 = vmatprep.subr.mxu0 0.0
        %917 = vmatpush1.msra.mxu0 0.0
        %918 = vmatprep.mubr.f32.mxu0 0.0
        %919 = vmatmul.mubr.f32.gmra.mrb[0].mxu0 %v852
        %v920 = vpop.f32.mrb[0].mxu0
        %v921 = vadd.f32 0.0, %v920
        %v922 = vpop.f32.mrb[0].mxu0
        %923 = vdwg.mxu0
        %v924 = vld [vmem:[%s2 + $0x20] sm:$0xff]
        %v925 = vld [vmem:[%s2 + $0x28] sm:$0xff]
        %v927 = vsel %vm280, %v921, 0
        %929 = vmatprep.subr.mxu0 0.0
        %930 = vmatpush1.msra.mxu0 %v924
        %931 = vmatprep.subr.mxu0 0.0
        %932 = vmatpush1.msra.mxu0 %v925
        %933 = vmatprep.subr.mxu0 0.0
        %934 = vmatpush1.msra.mxu0 0.0
        %935 = vmatprep.subr.mxu0 0.0
        %936 = vmatpush1.msra.mxu0 0.0
        %937 = vmatprep.subr.mxu0 0.0
        %938 = vmatpush1.msra.mxu0 0.0
        %939 = vmatprep.subr.mxu0 0.0
        %940 = vmatpush1.msra.mxu0 0.0
        %941 = vmatprep.subr.mxu0 0.0
        %942 = vmatpush1.msra.mxu0 0.0
        %943 = vmatprep.subr.mxu0 0.0
        %944 = vmatpush1.msra.mxu0 0.0
        %945 = vmatprep.subr.mxu0 0.0
        %946 = vmatpush1.msra.mxu0 0.0
        %947 = vmatprep.subr.mxu0 0.0
        %948 = vmatpush1.msra.mxu0 0.0
        %949 = vmatprep.subr.mxu0 0.0
        %950 = vmatpush1.msra.mxu0 0.0
        %951 = vmatprep.subr.mxu0 0.0
        %952 = vmatpush1.msra.mxu0 0.0
        %953 = vmatprep.subr.mxu0 0.0
        %954 = vmatpush1.msra.mxu0 0.0
        %955 = vmatprep.subr.mxu0 0.0
        %956 = vmatpush1.msra.mxu0 0.0
        %957 = vmatprep.subr.mxu0 0.0
        %958 = vmatpush1.msra.mxu0 0.0
        %959 = vmatprep.subr.mxu0 0.0
        %960 = vmatpush1.msra.mxu0 0.0
        %961 = vmatprep.subr.mxu0 0.0
        %962 = vmatpush1.msra.mxu0 0.0
        %963 = vmatprep.subr.mxu0 0.0
        %964 = vmatpush1.msra.mxu0 0.0
        %965 = vmatprep.subr.mxu0 0.0
        %966 = vmatpush1.msra.mxu0 0.0
        %967 = vmatprep.subr.mxu0 0.0
        %968 = vmatpush1.msra.mxu0 0.0
        %969 = vmatprep.subr.mxu0 0.0
        %970 = vmatpush1.msra.mxu0 0.0
        %971 = vmatprep.subr.mxu0 0.0
        %972 = vmatpush1.msra.mxu0 0.0
        %973 = vmatprep.subr.mxu0 0.0
        %974 = vmatpush1.msra.mxu0 0.0
        %975 = vmatprep.subr.mxu0 0.0
        %976 = vmatpush1.msra.mxu0 0.0
        %977 = vmatprep.subr.mxu0 0.0
        %978 = vmatpush1.msra.mxu0 0.0
        %979 = vmatprep.subr.mxu0 0.0
        %980 = vmatpush1.msra.mxu0 0.0
        %981 = vmatprep.subr.mxu0 0.0
        %982 = vmatpush1.msra.mxu0 0.0
        %983 = vmatprep.subr.mxu0 0.0
        %984 = vmatpush1.msra.mxu0 0.0
        %985 = vmatprep.subr.mxu0 0.0
        %986 = vmatpush1.msra.mxu0 0.0
        %987 = vmatprep.subr.mxu0 0.0
        %988 = vmatpush1.msra.mxu0 0.0
        %989 = vmatprep.subr.mxu0 0.0
        %990 = vmatpush1.msra.mxu0 0.0
        %991 = vmatprep.subr.mxu0 0.0
        %992 = vmatpush1.msra.mxu0 0.0
        %993 = vmatprep.mubr.f32.mxu0 0.0
        %994 = vmatmul.mubr.f32.gmra.mrb[0].mxu0 %v927
        %v995 = vpop.f32.mrb[0].mxu0
        %v996 = vadd.f32 0.0, %v995
        %v997 = vpop.f32.mrb[0].mxu0
        %998 = vdwg.mxu0
        %v999 = vadd.f32 %v755, %v996
        %1000 = vrot.lane.b32.xlu0 %v273, 80
        %v1001 = vpop.permute.xlu0 %1000
        %1002 = vrot.lane.b32.xlu0 %v273, 16
        %v1003 = vpop.permute.xlu0 %1002
        %v1004 = vsel %vm280, %v1001, 0
        %v1006 = vsel %vm280, %v1003, 0
        %1008 = vmatprep.subr.mxu0 0.0
        %1009 = vmatpush1.xpose.msra.mxu0 %v1006
        %1010 = vmatprep.subr.mxu0 0.0
        %1011 = vmatpush1.xpose.msra.mxu0 0.0
        %1012 = vmatprep.subr.mxu0 0.0
        %1013 = vmatpush1.xpose.msra.mxu0 0.0
        %1014 = vmatprep.subr.mxu0 0.0
        %1015 = vmatpush1.xpose.msra.mxu0 0.0
        %1016 = vmatprep.subr.mxu0 0.0
        %1017 = vmatpush1.xpose.msra.mxu0 0.0
        %1018 = vmatprep.subr.mxu0 0.0
        %1019 = vmatpush1.xpose.msra.mxu0 0.0
        %1020 = vmatprep.subr.mxu0 0.0
        %1021 = vmatpush1.xpose.msra.mxu0 0.0
        %1022 = vmatprep.subr.mxu0 0.0
        %1023 = vmatpush1.xpose.msra.mxu0 0.0
        %1024 = vmatprep.subr.mxu0 0.0
        %1025 = vmatpush1.xpose.msra.mxu0 0.0
        %1026 = vmatprep.subr.mxu0 0.0
        %1027 = vmatpush1.xpose.msra.mxu0 0.0
        %1028 = vmatprep.subr.mxu0 0.0
        %1029 = vmatpush1.xpose.msra.mxu0 0.0
        %1030 = vmatprep.subr.mxu0 0.0
        %1031 = vmatpush1.xpose.msra.mxu0 0.0
        %1032 = vmatprep.subr.mxu0 0.0
        %1033 = vmatpush1.xpose.msra.mxu0 0.0
        %1034 = vmatprep.subr.mxu0 0.0
        %1035 = vmatpush1.xpose.msra.mxu0 0.0
        %1036 = vmatprep.subr.mxu0 0.0
        %1037 = vmatpush1.xpose.msra.mxu0 0.0
        %1038 = vmatprep.subr.mxu0 0.0
        %1039 = vmatpush1.xpose.msra.mxu0 0.0
        %1040 = vmatprep.subr.mxu0 0.0
        %1041 = vmatpush1.xpose.msra.mxu0 0.0
        %1042 = vmatprep.subr.mxu0 0.0
        %1043 = vmatpush1.xpose.msra.mxu0 0.0
        %1044 = vmatprep.subr.mxu0 0.0
        %1045 = vmatpush1.xpose.msra.mxu0 0.0
        %1046 = vmatprep.subr.mxu0 0.0
        %1047 = vmatpush1.xpose.msra.mxu0 0.0
        %1048 = vmatprep.subr.mxu0 0.0
        %1049 = vmatpush1.xpose.msra.mxu0 0.0
        %1050 = vmatprep.subr.mxu0 0.0
        %1051 = vmatpush1.xpose.msra.mxu0 0.0
        %1052 = vmatprep.subr.mxu0 0.0
        %1053 = vmatpush1.xpose.msra.mxu0 0.0
        %1054 = vmatprep.subr.mxu0 0.0
        %1055 = vmatpush1.xpose.msra.mxu0 0.0
        %1056 = vmatprep.subr.mxu0 0.0
        %1057 = vmatpush1.xpose.msra.mxu0 0.0
        %1058 = vmatprep.subr.mxu0 0.0
        %1059 = vmatpush1.xpose.msra.mxu0 0.0
        %1060 = vmatprep.subr.mxu0 0.0
        %1061 = vmatpush1.xpose.msra.mxu0 0.0
        %1062 = vmatprep.subr.mxu0 0.0
        %1063 = vmatpush1.xpose.msra.mxu0 0.0
        %1064 = vmatprep.subr.mxu0 0.0
        %1065 = vmatpush1.xpose.msra.mxu0 0.0
        %1066 = vmatprep.subr.mxu0 0.0
        %1067 = vmatpush1.xpose.msra.mxu0 0.0
        %1068 = vmatprep.subr.mxu0 0.0
        %1069 = vmatpush1.xpose.msra.mxu0 0.0
        %1070 = vmatprep.subr.mxu0 0.0
        %1071 = vmatpush1.xpose.msra.mxu0 0.0
        %1072 = vmatprep.mubr.f32.mxu0 0.0
        %1073 = vmatmul.mubr.f32.gmra.mrb[0].mxu0 %v1004
        %v1074 = vpop.f32.mrb[0].mxu0
        %v1075 = vadd.f32 0.0, %v1074
        %v1076 = vpop.f32.mrb[0].mxu0
        %1077 = vdwg.mxu0
        %v1078 = vmul.f32 %v1075, 0.25
        %v1079 = vsel %vm356, %v1078, -inf
        %1080 = vmax.xlane.f32.xlu0 %v1079
        %v1081 = vpop.xlane.xlu0 %1080
        %v1082 = vsub.f32 %v1078, %v1081
        %v1083 = vmul.f32 %v1082, 1.442695
        %v1084 = vpow.pop %v1083
        %v1085 = vsel %vm356, %v1084, 0.0
        %1086 = vadd.xlane.f32.xlu0 %v1085
        %v1087 = vpop.xlane.xlu0 %1086
        %v1088 = vrcp.pop %v1087
        %v1089 = vmul.f32 %v1084, %v1088
        %1090 = vrot.lane.b32.xlu0 %v275, 80
        %v1091 = vpop.permute.xlu0 %1090
        %v1094 = vsel %vm356, %v1089, 0
        %1096 = vmatprep.subr.mxu0 0.0
        %1097 = vmatpush1.msra.mxu0 %v1091
        %1098 = vmatprep.subr.mxu0 0.0
        %1099 = vmatpush1.msra.mxu0 0.0
        %1100 = vmatprep.subr.mxu0 0.0
        %1101 = vmatpush1.msra.mxu0 0.0
        %1102 = vmatprep.subr.mxu0 0.0
        %1103 = vmatpush1.msra.mxu0 0.0
        %1104 = vmatprep.subr.mxu0 0.0
        %1105 = vmatpush1.msra.mxu0 0.0
        %1106 = vmatprep.subr.mxu0 0.0
        %1107 = vmatpush1.msra.mxu0 0.0
        %1108 = vmatprep.subr.mxu0 0.0
        %1109 = vmatpush1.msra.mxu0 0.0
        %1110 = vmatprep.subr.mxu0 0.0
        %1111 = vmatpush1.msra.mxu0 0.0
        %1112 = vmatprep.subr.mxu0 0.0
        %1113 = vmatpush1.msra.mxu0 0.0
        %1114 = vmatprep.subr.mxu0 0.0
        %1115 = vmatpush1.msra.mxu0 0.0
        %1116 = vmatprep.subr.mxu0 0.0
        %1117 = vmatpush1.msra.mxu0 0.0
        %1118 = vmatprep.subr.mxu0 0.0
        %1119 = vmatpush1.msra.mxu0 0.0
        %1120 = vmatprep.subr.mxu0 0.0
        %1121 = vmatpush1.msra.mxu0 0.0
        %1122 = vmatprep.subr.mxu0 0.0
        %1123 = vmatpush1.msra.mxu0 0.0
        %1124 = vmatprep.subr.mxu0 0.0
        %1125 = vmatpush1.msra.mxu0 0.0
        %1126 = vmatprep.subr.mxu0 0.0
        %1127 = vmatpush1.msra.mxu0 0.0
        %1128 = vmatprep.subr.mxu0 0.0
        %1129 = vmatpush1.msra.mxu0 0.0
        %1130 = vmatprep.subr.mxu0 0.0
        %1131 = vmatpush1.msra.mxu0 0.0
        %1132 = vmatprep.subr.mxu0 0.0
        %1133 = vmatpush1.msra.mxu0 0.0
        %1134 = vmatprep.subr.mxu0 0.0
        %1135 = vmatpush1.msra.mxu0 0.0
        %1136 = vmatprep.subr.mxu0 0.0
        %1137 = vmatpush1.msra.mxu0 0.0
        %1138 = vmatprep.subr.mxu0 0.0
        %1139 = vmatpush1.msra.mxu0 0.0
        %1140 = vmatprep.subr.mxu0 0.0
        %1141 = vmatpush1.msra.mxu0 0.0
        %1142 = vmatprep.subr.mxu0 0.0
        %1143 = vmatpush1.msra.mxu0 0.0
        %1144 = vmatprep.subr.mxu0 0.0
        %1145 = vmatpush1.msra.mxu0 0.0
        %1146 = vmatprep.subr.mxu0 0.0
        %1147 = vmatpush1.msra.mxu0 0.0
        %1148 = vmatprep.subr.mxu0 0.0
        %1149 = vmatpush1.msra.mxu0 0.0
        %1150 = vmatprep.subr.mxu0 0.0
        %1151 = vmatpush1.msra.mxu0 0.0
        %1152 = vmatprep.subr.mxu0 0.0
        %1153 = vmatpush1.msra.mxu0 0.0
        %1154 = vmatprep.subr.mxu0 0.0
        %1155 = vmatpush1.msra.mxu0 0.0
        %1156 = vmatprep.subr.mxu0 0.0
        %1157 = vmatpush1.msra.mxu0 0.0
        %1158 = vmatprep.subr.mxu0 0.0
        %1159 = vmatpush1.msra.mxu0 0.0
        %1160 = vmatprep.mubr.f32.mxu0 0.0
        %1161 = vmatmul.mubr.f32.gmra.mrb[0].mxu0 %v1094
        %v1162 = vpop.f32.mrb[0].mxu0
        %v1163 = vadd.f32 0.0, %v1162
        %v1164 = vpop.f32.mrb[0].mxu0
        %1165 = vdwg.mxu0
        %v1166 = vld [vmem:[%s2 + $0x30] sm:$0xff]
        %v1167 = vld [vmem:[%s2 + $0x38] sm:$0xff]
        %v1169 = vsel %vm280, %v1163, 0
        %1171 = vmatprep.subr.mxu0 0.0
        %1172 = vmatpush1.msra.mxu0 %v1166
        %1173 = vmatprep.subr.mxu0 0.0
        %1174 = vmatpush1.msra.mxu0 %v1167
        %1175 = vmatprep.subr.mxu0 0.0
        %1176 = vmatpush1.msra.mxu0 0.0
        %1177 = vmatprep.subr.mxu0 0.0
        %1178 = vmatpush1.msra.mxu0 0.0
        %1179 = vmatprep.subr.mxu0 0.0
        %1180 = vmatpush1.msra.mxu0 0.0
        %1181 = vmatprep.subr.mxu0 0.0
        %1182 = vmatpush1.msra.mxu0 0.0
        %1183 = vmatprep.subr.mxu0 0.0
        %1184 = vmatpush1.msra.mxu0 0.0
        %1185 = vmatprep.subr.mxu0 0.0
        %1186 = vmatpush1.msra.mxu0 0.0
        %1187 = vmatprep.subr.mxu0 0.0
        %1188 = vmatpush1.msra.mxu0 0.0
        %1189 = vmatprep.subr.mxu0 0.0
        %1190 = vmatpush1.msra.mxu0 0.0
        %1191 = vmatprep.subr.mxu0 0.0
        %1192 = vmatpush1.msra.mxu0 0.0
        %1193 = vmatprep.subr.mxu0 0.0
        %1194 = vmatpush1.msra.mxu0 0.0
        %1195 = vmatprep.subr.mxu0 0.0
        %1196 = vmatpush1.msra.mxu0 0.0
        %1197 = vmatprep.subr.mxu0 0.0
        %1198 = vmatpush1.msra.mxu0 0.0
        %1199 = vmatprep.subr.mxu0 0.0
        %1200 = vmatpush1.msra.mxu0 0.0
        %1201 = vmatprep.subr.mxu0 0.0
        %1202 = vmatpush1.msra.mxu0 0.0
        %1203 = vmatprep.subr.mxu0 0.0
        %1204 = vmatpush1.msra.mxu0 0.0
        %1205 = vmatprep.subr.mxu0 0.0
        %1206 = vmatpush1.msra.mxu0 0.0
        %1207 = vmatprep.subr.mxu0 0.0
        %1208 = vmatpush1.msra.mxu0 0.0
        %1209 = vmatprep.subr.mxu0 0.0
        %1210 = vmatpush1.msra.mxu0 0.0
        %1211 = vmatprep.subr.mxu0 0.0
        %1212 = vmatpush1.msra.mxu0 0.0
        %1213 = vmatprep.subr.mxu0 0.0
        %1214 = vmatpush1.msra.mxu0 0.0
        %1215 = vmatprep.subr.mxu0 0.0
        %1216 = vmatpush1.msra.mxu0 0.0
        %1217 = vmatprep.subr.mxu0 0.0
        %1218 = vmatpush1.msra.mxu0 0.0
        %1219 = vmatprep.subr.mxu0 0.0
        %1220 = vmatpush1.msra.mxu0 0.0
        %1221 = vmatprep.subr.mxu0 0.0
        %1222 = vmatpush1.msra.mxu0 0.0
        %1223 = vmatprep.subr.mxu0 0.0
        %1224 = vmatpush1.msra.mxu0 0.0
        %1225 = vmatprep.subr.mxu0 0.0
        %1226 = vmatpush1.msra.mxu0 0.0
        %1227 = vmatprep.subr.mxu0 0.0
        %1228 = vmatpush1.msra.mxu0 0.0
        %1229 = vmatprep.subr.mxu0 0.0
        %1230 = vmatpush1.msra.mxu0 0.0
        %1231 = vmatprep.subr.mxu0 0.0
        %1232 = vmatpush1.msra.mxu0 0.0
        %1233 = vmatprep.subr.mxu0 0.0
        %1234 = vmatpush1.msra.mxu0 0.0
        %1235 = vmatprep.mubr.f32.mxu0 0.0
        %1236 = vmatmul.mubr.f32.gmra.mrb[0].mxu0 %v1169
        %v1237 = vpop.f32.mrb[0].mxu0
        %v1238 = vadd.f32 0.0, %v1237
        %v1239 = vpop.f32.mrb[0].mxu0
        %1240 = vdwg.mxu0
        %v1241 = vadd.f32 %v999, %v1238
        %v1242 = vld [vmem:[%s3] sm:$0x1]
        %v1244 = vlaneseq
        %v1245 = vshrl.u32 %v1244, 7
        %v1246 = vsub.s32 0, %v1245
        %v1247 = vrot.slane %v1242, %v1246
        %v1249 = vadd.f32 %v1241, %v1247
        %1250 = vst.msk [vmem:[%s188] sm:$0xff] %vm202, %v1249
        %s1251 = sand.u32 %s115, 1
        %s1252 = scalar_lea.sflag [#allocation3], %s1251
        %s1253 = sand.u32 %s115, 1
        %s1254 = smul.addr %s1253, 8
        %s1255 = scalar_lea.vmem [#allocation2], %s1254
        // Predicated region
        $region37: #{tpu_custom_call.1} parent=35 // pred_check
          %p1256 = pneg %p125
        $region38: #{tpu_custom_call.1} parent=35 // pred_check_branch
          %1258 = sbr.rel (%p1256) target = $region40
        $region39: #{tpu_custom_call.1} parent=35 // pred_region
          %s1260 = ssub.s32 128, 128
          %1261 = vsyncadd %s1252, %s1260
          %s1262 = smul.addr %s18, 128
          %s1263 = scalar_lea.hbm %s4, %s1262
          %s1265 = sshll.u32 %s1255, 4
          %s1266 = int_to_ptr.vmem [resolvable:$true] %s1265
          %1268 = dma.vmem_to_hbm [thread:$0]  %s1266, 128, %s1263, %s1252
        $region40: #{tpu_custom_call.1} parent=35 // pred_fallthru
          _
      $region36: #{tpu_custom_call.1} parent=5 // pred_fallthru
        _
      %p1269 = scmp.le.s32.totalorder 2, %s13
      // Predicated region
      $region41: #{tpu_custom_call.1} parent=5 // pred_check
        %p1270 = pneg %p1269
      $region42: #{tpu_custom_call.1} parent=5 // pred_check_branch
        %1272 = sbr.rel (%p1270) target = $region44
      $region43: #{tpu_custom_call.1} parent=5 // pred_region
        %s1273 = ssub.s32 %s13, 2
        // Predicated region
        $region45: #{tpu_custom_call.1} parent=43 // pred_check
          %p1274 = pneg %p131
        $region46: #{tpu_custom_call.1} parent=43 // pred_check_branch
          %1276 = sbr.rel (%p1274) target = $region48
        $region47: #{tpu_custom_call.1} parent=43 // pred_region
          %s1277 = sand.u32 %s116, 1
          %s1278 = scalar_lea.sflag [#allocation3], %s1277
          %s1279 = sand.u32 %s116, 1
          %s1280 = smul.addr %s1279, 8
          %s1281 = scalar_lea.vmem [#allocation2], %s1280
          %1282 = dma.done %s1278, 128
        $region48: #{tpu_custom_call.1} parent=43 // pred_fallthru
          _
      $region44: #{tpu_custom_call.1} parent=5 // pred_fallthru
        _
    $region6: #{tpu_custom_call.1} parent=1 // loop_footer
      %s17 = sadd.s32 1, %s13
    $region7: #{tpu_custom_call.1} parent=1 // loop_footer_branch
      %12 = sbr.rel target = $region3
    $region8: #{tpu_custom_call.1} parent=1 // loop_exit
      _
    %1283 = vsyncpa [#allocation3], 1
    %s1284 = scalar_lea.sflag [#allocation3], 1
    %1285 = vsyncpa %s1284, 1

</llo_original>
